<compile_context>
chip_gen: v6e
topology: v6e:2x2x1
jax: 0.10.0
libtpu: 0.0.40
codegen_flags: <defaults>
</compile_context>

<pallas_src>
import jax
import jax.numpy as jnp
from jax.experimental import pallas as pl
from jax.experimental.pallas import tpu as pltpu


def _round_up(x, m):
    return ((x + m - 1) // m) * m


def _linear_kernel(x_ref, t_ref, w_ref, o_ref):
    # x_ref: (TM, dX)     VMEM  batch tile of X (native dtype, ragged tail OK)
    # t_ref: (1, 1, TM)   VMEM  matching tile of T, lane-dense
    # w_ref: (8, dX + 2)  VMEM  [w_x | w_t | bias] f32 row, replicated to 8 sublanes
    # o_ref: (1, 1, TM)   VMEM  lane-dense f32 output tile
    tm, dX = x_ref.shape
    x = x_ref[...].astype(jnp.float32)              # per-block VPU upcast (no-op for f32)
    w = w_ref[...]                                  # (8, dX + 2) f32
    # MXU, transposed-rhs dim-numbers (same form as flash-attn Q.K^T):
    #   (8, dX) . (TM, dX)^T -> (8, TM), rows identical, lane-dense in TM.
    s = jax.lax.dot_general(
        w[:, :dX], x, (((1,), (1,)), ((), ())),
        preferred_element_type=jnp.float32,
        precision=jax.lax.Precision.HIGHEST)
    y = s[0:1, :].reshape(1, 1, tm)                 # (1, 1, TM), free reshape (lane-dense)
    t = t_ref[...].astype(jnp.float32)              # (1, 1, TM)
    w_t = w[0:1, dX:dX + 1]                         # (1, 1) -> broadcasts
    b = w[0:1, dX + 1:dX + 2]                       # (1, 1) -> broadcasts
    o_ref[...] = y + t * w_t + b


def linear_forward(X, T, weight, bias, *, tm=8192):
    """X: [N, d-1], T: [N], weight: [1, d], bias: [1]  ->  [N, 1] float32."""
    N, dX = X.shape

    # Batch tile: multiple of 128; keep >= 2 tiles when N allows it so the
    # "parallel" grid axis can span both TensorCores on v7x.
    half = _round_up(max(pl.cdiv(N, 2), 1), 128)
    tm = max(128, min(_round_up(int(tm), 128), half))
    num_tiles = pl.cdiv(N, tm)
    n_pad = num_tiles * tm

    # T is tiny: pad + reshape to lane-dense tiles.  X is NOT padded.
    T_p = jnp.pad(T, (0, n_pad - N)) if n_pad != N else T
    t_tiles = T_p.reshape(num_tiles, 1, tm)

    # One merged, grid-resident parameter operand: [w_x(dX) | w_t | bias],
    # replicated to 8 sublanes for a natively tiled MXU lhs.
    wrow = jnp.concatenate(
        [weight[0, :dX].astype(jnp.float32),
         weight[0, dX:dX + 1].astype(jnp.float32),
         bias.astype(jnp.float32)], axis=0)          # (dX + 2,)
    w_op = jnp.tile(wrow[None, :], (8, 1))           # (8, dX + 2)

    out = pl.pallas_call(
        _linear_kernel,
        out_shape=jax.ShapeDtypeStruct((num_tiles, 1, tm), jnp.float32),
        grid=(num_tiles,),
        in_specs=[
            pl.BlockSpec((tm, dX), lambda i: (i, 0)),        # X tile (ragged last block OK)
            pl.BlockSpec((1, 1, tm), lambda i: (i, 0, 0)),   # T tile, lane-dense
            pl.BlockSpec((8, dX + 2), lambda i: (0, 0)),     # params, constant across grid
        ],
        out_specs=pl.BlockSpec((1, 1, tm), lambda i: (i, 0, 0)),
        compiler_params=pltpu.CompilerParams(
            dimension_semantics=("parallel",)),
    )(X, t_tiles, w_op)

    return out.reshape(n_pad, 1)[:N]


if __name__ == "__main__":
    key = jax.random.PRNGKey(0)
    k_x, k_t, k_w, k_b = jax.random.split(key, 4)

    N = 250        # non-multiple of 128 -> exercises the ragged last X block
    d = 32         # total feature dim of nn.Linear(d, 1)

    X = jax.random.normal(k_x, (N, d - 1), dtype=jnp.float32)
    T = jax.random.normal(k_t, (N,), dtype=jnp.float32)

    # Deterministic params (mimic nn.Linear's uniform(-1/sqrt(d), 1/sqrt(d)))
    bound = 1.0 / jnp.sqrt(jnp.float32(d))
    weight = jax.random.uniform(k_w, (1, d), minval=-bound, maxval=bound,
                                dtype=jnp.float32)
    bias = jax.random.uniform(k_b, (1,), minval=-bound, maxval=bound,
                              dtype=jnp.float32)

    # Reference (matches the PyTorch forward semantics).
    ref = jnp.concatenate([X, T[:, None]], axis=1) @ weight.T + bias

    out = jax.block_until_ready(linear_forward(X, T, weight, bias))
    assert out.shape == (N, 1)
    assert jnp.allclose(out, ref, atol=1e-4, rtol=1e-4)

    # Larger ragged batch -> 2 parallel tiles of tm=512 with an unpadded,
    # partially out-of-range last X block.
    N2 = 1000
    X2 = jax.random.normal(k_x, (N2, d - 1), dtype=jnp.float32)
    T2 = jax.random.normal(k_t, (N2,), dtype=jnp.float32)
    ref2 = jnp.concatenate([X2, T2[:, None]], axis=1) @ weight.T + bias
    out2 = jax.block_until_ready(linear_forward(X2, T2, weight, bias))
    assert out2.shape == (N2, 1)
    assert jnp.allclose(out2, ref2, atol=1e-4, rtol=1e-4)

    print("KERNEL_OK")
</pallas_src>

<mosaic_0001>
module attributes {stable_mosaic.version = 11 : i64} {
  func.func @_linear_kernel(%arg0: i32, %arg1: memref<128x31xf32, #tpu.memory_space<vmem>>, %arg2: memref<1x1x128xf32, #tpu.memory_space<vmem>>, %arg3: memref<8x33xf32, #tpu.memory_space<vmem>>, %arg4: memref<1x1x128xf32, #tpu.memory_space<vmem>>) attributes {dimension_semantics = [#tpu.dimension_semantics<parallel>], iteration_bounds = array<i64: 2>, scalar_prefetch = 0 : i64, scratch_operands = 0 : i64, tpu.core_type = #tpu.core_type<tc>, window_params = [{transform_indices = @transform_0, window_bounds = array<i64: 128, 31>}, {transform_indices = @transform_1, window_bounds = array<i64: 1, 1, 128>}, {pipeline_mode = #tpu.pipeline_mode<synchronous>, transform_indices = @transform_2, window_bounds = array<i64: 8, 33>}, {transform_indices = @transform_3, window_bounds = array<i64: 1, 1, 128>}]} {
    %c0 = arith.constant 0 : index
    %c0_0 = arith.constant 0 : index
    %0 = vector.load %arg1[%c0, %c0_0] : memref<128x31xf32, #tpu.memory_space<vmem>>, vector<128x31xf32>
    %c0_1 = arith.constant 0 : index
    %c0_2 = arith.constant 0 : index
    %1 = vector.load %arg3[%c0_1, %c0_2] : memref<8x33xf32, #tpu.memory_space<vmem>>, vector<8x33xf32>
    %2 = vector.extract_strided_slice %1 {offsets = [0, 0], sizes = [8, 31], strides = [1, 1]} : vector<8x33xf32> to vector<8x31xf32>
    %cst = arith.constant dense<0.000000e+00> : vector<8x128xf32>
    %3 = tpu.matmul %2, %0, %cst {dimension_numbers = #tpu.dot_dimension_numbers<[1], [1], [0], [0], [0, 0, 1, 0], [], []>, precision = #tpu.contract_precision<fp32>} : vector<8x31xf32>, vector<128x31xf32>, vector<8x128xf32> -> vector<8x128xf32>
    %4 = vector.extract_strided_slice %3 {offsets = [0, 0], sizes = [1, 128], strides = [1, 1]} : vector<8x128xf32> to vector<1x128xf32>
    %5 = vector.shape_cast %4 : vector<1x128xf32> to vector<1x1x128xf32>
    %c0_3 = arith.constant 0 : index
    %c0_4 = arith.constant 0 : index
    %c0_5 = arith.constant 0 : index
    %6 = vector.load %arg2[%c0_3, %c0_4, %c0_5] : memref<1x1x128xf32, #tpu.memory_space<vmem>>, vector<1x1x128xf32>
    %7 = vector.extract_strided_slice %1 {offsets = [0, 31], sizes = [1, 1], strides = [1, 1]} : vector<8x33xf32> to vector<1x1xf32>
    %8 = vector.extract_strided_slice %1 {offsets = [0, 32], sizes = [1, 1], strides = [1, 1]} : vector<8x33xf32> to vector<1x1xf32>
    %9 = vector.shape_cast %7 : vector<1x1xf32> to vector<1x1x1xf32>
    %10 = vector.broadcast %9 : vector<1x1x1xf32> to vector<1x1x128xf32>
    %11 = arith.mulf %6, %10 : vector<1x1x128xf32>
    %12 = arith.addf %5, %11 : vector<1x1x128xf32>
    %13 = vector.shape_cast %8 : vector<1x1xf32> to vector<1x1x1xf32>
    %14 = vector.broadcast %13 : vector<1x1x1xf32> to vector<1x1x128xf32>
    %15 = arith.addf %12, %14 : vector<1x1x128xf32>
    %c0_6 = arith.constant 0 : index
    %c0_7 = arith.constant 0 : index
    %c0_8 = arith.constant 0 : index
    %16 = vector.load %arg4[%c0_6, %c0_7, %c0_8] : memref<1x1x128xf32, #tpu.memory_space<vmem>>, vector<1x1x128xf32>
    tpu.vector_store %arg4[%c0_6, %c0_7, %c0_8], %15 {strides = array<i32>} : memref<1x1x128xf32, #tpu.memory_space<vmem>>, vector<1x1x128xf32>,
    return
  }
  func.func @transform_0(%arg0: i32) -> (i32, i32) {
    %c0_i32 = arith.constant 0 : i32
    %c0_i32_0 = arith.constant 0 : i32
    return %arg0, %c0_i32 : i32, i32
  }
  func.func @transform_1(%arg0: i32) -> (i32, i32, i32) {
    %c0_i32 = arith.constant 0 : i32
    %c0_i32_0 = arith.constant 0 : i32
    %c0_i32_1 = arith.constant 0 : i32
    return %arg0, %c0_i32, %c0_i32_0 : i32, i32, i32
  }
  func.func @transform_2(%arg0: i32) -> (i32, i32) {
    %c0_i32 = arith.constant 0 : i32
    %c0_i32_0 = arith.constant 0 : i32
    %c0_i32_1 = arith.constant 0 : i32
    return %c0_i32, %c0_i32_0 : i32, i32
  }
  func.func @transform_3(%arg0: i32) -> (i32, i32, i32) {
    %c0_i32 = arith.constant 0 : i32
    %c0_i32_0 = arith.constant 0 : i32
    %c0_i32_1 = arith.constant 0 : i32
    return %arg0, %c0_i32, %c0_i32_0 : i32, i32, i32
  }
}

</mosaic_0001>

<llo_original>
// kernel: tpu_custom_call.1
$region0: #{tpu_custom_call.1}
  #allocation0 [shape = 'u32[]', space=smem, size = 0x4, offset = 0x4, fixed_abs, tag = 'smem constant byte address 0x4 - core index']
  #allocation1 [shape = 'u32[144,128]{1,0:T(1,128)}', space=vmem, size = 0x12000, scoped, tag = 'internal scratch']
  %s0 = inlined_call_operand.vmem [shape: f32[250,31], index: 0, kind: input, shape index: {}]
  %s1 = inlined_call_operand.vmem [shape: f32[2,1,128], index: 1, kind: input, shape index: {}]
  %s2 = inlined_call_operand.vmem [shape: f32[8,33], index: 2, kind: input, shape index: {}]
  %s3 = inlined_call_operand.hbm [shape: f32[2,1,128], index: 3, kind: output, shape index: {}]
  %s4 = sld [smem:[#allocation0]]
  $region45: #{tpu_custom_call.1} parent=0
    _
  %s6 = ssub.s32 1, %s4
  %s7 = scalar_select 0, %s6, %s4
  $region1: #{tpu_custom_call.1} parent=0
    #allocation2 [shape = 'u8[1024]{0}', space=vmem, size = 0x400, scoped, tag = 'output window, operand 0']
    #allocation3 [shape = 's32[2]{0}', space=sflag, size = 0x8, scoped, tag = 'scoped memory for tpu_custom_call.1']
    %8 = vsyncpa [#allocation3], 0
    %s9 = scalar_lea.sflag [#allocation3], 1
    %10 = vsyncpa %s9, 0
    loop: start=0, step=1, limit=4
    $region2: #{tpu_custom_call.1} parent=1 // loop_pre_header
      _
    $region3: #{tpu_custom_call.1} parent=1 // loop_header
      %s12 = sphi 0, %s16
      %p13 = scmp.ge.s32.totalorder %s12, 4
      %s22 = sphi 0, %s24
      %s25 = sphi 0, %s22
      %s26 = sphi 0, %s25
      %s42 = sphi 0, %s26
      %s48 = sphi 0, %s50
      %s51 = sphi 0, %s48
      %s52 = sphi 0, %s51
      %s68 = sphi 0, %s52
      %s72 = sphi 0, %s72
      %s74 = sphi 0, %s72
      %s75 = sphi 0, %s74
      %s89 = sphi 0, %s75
      %s95 = sphi 0, %s97
      %s98 = sphi 0, %s95
      %s99 = sphi 0, %s98
      %s115 = sphi 0, %s99
    $region4: #{tpu_custom_call.1} parent=1 // loop_header_branch
      %15 = sbr.rel (%p13) target = $region8
    $region5: #{tpu_custom_call.1} parent=1 // loop_body
      %s17 = ssub.s32 %s12, 1
      %s18 = ssub.s32 %s12, 2
      %s19 = sadd.s32 %s12, 1
      %s20 = ssub.s32 %s12, %s19
      %p21 = scmp.eq.s32.totalorder %s20, 0
      %s23 = sadd.s32 %s22, 1
      %s24 = scalar_select %p21, %s22, %s23
      %p27 = pneg %p21
      %p28 = scmp.eq.s32.totalorder %s12, 1
      %p29 = por %p27, %p28
      %p30 = scmp.ne.s32.totalorder %s22, %s25
      %p31 = scmp.eq.s32.totalorder %s12, 0
      %p32 = por %p30, %p31
      %p33 = scmp.ne.s32.totalorder %s22, %s25
      %p34 = scmp.eq.s32.totalorder %s17, 1
      %p35 = por %p33, %p34
      %p36 = scmp.ne.s32.totalorder %s25, %s26
      %p37 = scmp.eq.s32.totalorder %s17, 0
      %p38 = por %p36, %p37
      %p39 = scmp.ne.s32.totalorder %s25, %s26
      %p40 = scmp.eq.s32.totalorder %s18, 1
      %p41 = por %p39, %p40
      %p43 = scmp.ne.s32.totalorder %s26, %s42
      %p44 = scmp.eq.s32.totalorder %s18, 0
      %p45 = por %p43, %p44
      %s46 = ssub.s32 %s12, %s19
      %p47 = scmp.eq.s32.totalorder %s46, 0
      %s49 = sadd.s32 %s48, 1
      %s50 = scalar_select %p47, %s48, %s49
      %p53 = pneg %p47
      %p54 = scmp.eq.s32.totalorder %s12, 1
      %p55 = por %p53, %p54
      %p56 = scmp.ne.s32.totalorder %s48, %s51
      %p57 = scmp.eq.s32.totalorder %s12, 0
      %p58 = por %p56, %p57
      %p59 = scmp.ne.s32.totalorder %s48, %s51
      %p60 = scmp.eq.s32.totalorder %s17, 1
      %p61 = por %p59, %p60
      %p62 = scmp.ne.s32.totalorder %s51, %s52
      %p63 = scmp.eq.s32.totalorder %s17, 0
      %p64 = por %p62, %p63
      %p65 = scmp.ne.s32.totalorder %s51, %s52
      %p66 = scmp.eq.s32.totalorder %s18, 1
      %p67 = por %p65, %p66
      %p69 = scmp.ne.s32.totalorder %s52, %s68
      %p70 = scmp.eq.s32.totalorder %s18, 0
      %p71 = por %p69, %p70
      %s73 = sadd.s32 %s72, 1
      %p76 = scmp.eq.s32.totalorder %s12, 1
      %p77 = scmp.ne.s32.totalorder %s72, %s74
      %p78 = scmp.eq.s32.totalorder %s12, 0
      %p79 = por %p77, %p78
      %p80 = scmp.ne.s32.totalorder %s72, %s74
      %p81 = scmp.eq.s32.totalorder %s17, 1
      %p82 = por %p80, %p81
      %p83 = scmp.ne.s32.totalorder %s74, %s75
      %p84 = scmp.eq.s32.totalorder %s17, 0
      %p85 = por %p83, %p84
      %p86 = scmp.ne.s32.totalorder %s74, %s75
      %p87 = scmp.eq.s32.totalorder %s18, 1
      %p88 = por %p86, %p87
      %p90 = scmp.ne.s32.totalorder %s75, %s89
      %p91 = scmp.eq.s32.totalorder %s18, 0
      %p92 = por %p90, %p91
      %s93 = ssub.s32 %s12, %s19
      %p94 = scmp.eq.s32.totalorder %s93, 0
      %s96 = sadd.s32 %s95, 1
      %s97 = scalar_select %p94, %s95, %s96
      %p100 = pneg %p94
      %p101 = scmp.eq.s32.totalorder %s12, 1
      %p102 = por %p100, %p101
      %p103 = scmp.ne.s32.totalorder %s95, %s98
      %p104 = scmp.eq.s32.totalorder %s12, 0
      %p105 = por %p103, %p104
      %p106 = scmp.ne.s32.totalorder %s95, %s98
      %p107 = scmp.eq.s32.totalorder %s17, 1
      %p108 = por %p106, %p107
      %p109 = scmp.ne.s32.totalorder %s98, %s99
      %p110 = scmp.eq.s32.totalorder %s17, 0
      %p111 = por %p109, %p110
      %p112 = scmp.ne.s32.totalorder %s98, %s99
      %p113 = scmp.eq.s32.totalorder %s18, 1
      %p114 = por %p112, %p113
      %p116 = scmp.ne.s32.totalorder %s99, %s115
      %p117 = scmp.eq.s32.totalorder %s18, 0
      %p118 = por %p116, %p117
      %p119 = scmp.le.s32.totalorder 1, %s12
      %p120 = scmp.lt.s32.totalorder %s12, 3
      %p121 = pnand %p119, %p120
      %p122 = pneg %p121
      // Predicated region
      $region9: #{tpu_custom_call.1} parent=5 // pred_check
        _
      $region10: #{tpu_custom_call.1} parent=5 // pred_check_branch
        %124 = sbr.rel (%p121) target = $region12
      $region11: #{tpu_custom_call.1} parent=5 // pred_region
        %s125 = ssub.s32 %s12, 1
        // Predicated region
        $region13: #{tpu_custom_call.1} parent=11 // pred_check
          %p126 = pneg %p85
        $region14: #{tpu_custom_call.1} parent=11 // pred_check_branch
          %128 = sbr.rel (%p126) target = $region16
        $region15: #{tpu_custom_call.1} parent=11 // pred_region
          _
        $region16: #{tpu_custom_call.1} parent=11 // pred_fallthru
          _
      $region12: #{tpu_custom_call.1} parent=5 // pred_fallthru
        _
      %p129 = scmp.lt.s32.totalorder %s12, 2
      // Predicated region
      $region17: #{tpu_custom_call.1} parent=5 // pred_check
        %p130 = pneg %p129
      $region18: #{tpu_custom_call.1} parent=5 // pred_check_branch
        %132 = sbr.rel (%p130) target = $region20
      $region19: #{tpu_custom_call.1} parent=5 // pred_region
        // Predicated region
        $region21: #{tpu_custom_call.1} parent=19 // pred_check
          %p133 = pneg %p32
        $region22: #{tpu_custom_call.1} parent=19 // pred_check_branch
          %135 = sbr.rel (%p133) target = $region24
        $region23: #{tpu_custom_call.1} parent=19 // pred_region
          %s136 = smul.u32 16, %s12
          %p137 = scmp.lt.s32.totalorder %s136, 31
          %s138 = scalar_select %p137, %s136, 31
          %s139 = smul.addr %s138, 8
          %s140 = scalar_lea.vmem %s0, %s139
          %s141 = smul.u32 16, %s12
        $region24: #{tpu_custom_call.1} parent=19 // pred_fallthru
          _
        // Predicated region
        $region25: #{tpu_custom_call.1} parent=19 // pred_check
          %p142 = pneg %p58
        $region26: #{tpu_custom_call.1} parent=19 // pred_check_branch
          %144 = sbr.rel (%p142) target = $region28
        $region27: #{tpu_custom_call.1} parent=19 // pred_region
          %p145 = scmp.lt.s32.totalorder %s12, 1
          %s146 = scalar_select %p145, %s12, 1
          %s147 = scalar_lea.vmem %s1, %s146
        $region28: #{tpu_custom_call.1} parent=19 // pred_fallthru
          _
      $region20: #{tpu_custom_call.1} parent=5 // pred_fallthru
        _
      %p148 = scmp.le.s32.totalorder 1, %s12
      %p149 = scmp.lt.s32.totalorder %s12, 3
      %p150 = pnand %p148, %p149
      %p151 = pneg %p150
      // Predicated region
      $region29: #{tpu_custom_call.1} parent=5 // pred_check
        _
      $region30: #{tpu_custom_call.1} parent=5 // pred_check_branch
        %153 = sbr.rel (%p150) target = $region32
      $region31: #{tpu_custom_call.1} parent=5 // pred_region
        %s154 = ssub.s32 %s12, 1
        %s155 = smul.u32 16, %s17
        %p156 = scmp.lt.s32.totalorder %s155, 31
        %s157 = scalar_select %p156, %s155, 31
        %s158 = smul.addr %s157, 8
        %s159 = scalar_lea.vmem %s0, %s158
        %p160 = pneg %p38
        %p161 = pneg %p35
        %p162 = scmp.lt.s32.totalorder %s17, 1
        %s163 = scalar_select %p162, %s17, 1
        %s164 = scalar_lea.vmem %s1, %s163
        %p165 = pneg %p64
        %p166 = pneg %p61
        %p167 = pneg %p85
        %p168 = pneg %p82
        %p169 = pneg %p111
        %p170 = pneg %p108
        %s171 = sand.u32 %s98, 1
        %s172 = scalar_lea.sflag [#allocation3], %s171
        %s173 = sand.u32 %s98, 1
        %s174 = scalar_lea.vmem [#allocation2], %s173
        %s175 = smul.u32 16, %s17
        %p176 = scmp.lt.s32.totalorder %s175, 31
        %s177 = scalar_select %p176, %s175, 31
        %s178 = smul.addr %s177, 8
        %s179 = scalar_lea.vmem %s0, %s178
        %s180 = smul.u32 16, %s17
        %p181 = scmp.lt.s32.totalorder %s17, 1
        %s182 = scalar_select %p181, %s17, 1
        %s183 = scalar_lea.vmem %s1, %s182
        %v184 = vld [vmem:[%s179] sm:$0xff]
        %v185 = vld [vmem:[%s179 + $0x8] sm:$0xff]
        %v186 = vld [vmem:[%s179 + $0x10] sm:$0xff]
        %v187 = vld [vmem:[%s179 + $0x18] sm:$0xff]
        %v188 = vld [vmem:[%s179 + $0x20] sm:$0xff]
        %v189 = vld [vmem:[%s179 + $0x28] sm:$0xff]
        %v190 = vld [vmem:[%s179 + $0x30] sm:$0xff]
        %v191 = vld [vmem:[%s179 + $0x38] sm:$0xff]
        %v192 = vld [vmem:[%s179 + $0x40] sm:$0xff]
        %v193 = vld [vmem:[%s179 + $0x48] sm:$0xff]
        %v194 = vld [vmem:[%s179 + $0x50] sm:$0xff]
        %v195 = vld [vmem:[%s179 + $0x58] sm:$0xff]
        %v196 = vld [vmem:[%s179 + $0x60] sm:$0xff]
        %v197 = vld [vmem:[%s179 + $0x68] sm:$0xff]
        %v198 = vld [vmem:[%s179 + $0x70] sm:$0xff]
        %v199 = vld [vmem:[%s179 + $0x78] sm:$0xff]
        %v200 = vld [vmem:[%s2] sm:$0xff]
        %vm201 = vcmask 252928
        %v203 = vsel %vm201, %v200, 0
        %v206 = vsel %vm201, %v184, 0
        %v209 = vsel %vm201, %v185, 0
        %v212 = vsel %vm201, %v186, 0
        %v215 = vsel %vm201, %v187, 0
        %v218 = vsel %vm201, %v188, 0
        %v221 = vsel %vm201, %v189, 0
        %v224 = vsel %vm201, %v190, 0
        %v227 = vsel %vm201, %v191, 0
        %v230 = vsel %vm201, %v192, 0
        %v233 = vsel %vm201, %v193, 0
        %v236 = vsel %vm201, %v194, 0
        %v239 = vsel %vm201, %v195, 0
        %v242 = vsel %vm201, %v196, 0
        %v245 = vsel %vm201, %v197, 0
        %v248 = vsel %vm201, %v198, 0
        %v251 = vsel %vm201, %v199, 0
        %253 = vmatprep.subr.mxu0 0.0
        %v254 = vand.u32 %v251, 4294901760
        %255 = vmatpush1.xpose.msra.mxu0 %v254
        %256 = vmatprep.subr.mxu0 0.0
        %v257 = vand.u32 %v248, 4294901760
        %258 = vmatpush1.xpose.msra.mxu0 %v257
        %259 = vmatprep.subr.mxu0 0.0
        %v260 = vand.u32 %v245, 4294901760
        %261 = vmatpush1.xpose.msra.mxu0 %v260
        %262 = vmatprep.subr.mxu0 0.0
        %v263 = vand.u32 %v242, 4294901760
        %264 = vmatpush1.xpose.msra.mxu0 %v263
        %265 = vmatprep.subr.mxu0 0.0
        %v266 = vand.u32 %v239, 4294901760
        %267 = vmatpush1.xpose.msra.mxu0 %v266
        %268 = vmatprep.subr.mxu0 0.0
        %v269 = vand.u32 %v236, 4294901760
        %270 = vmatpush1.xpose.msra.mxu0 %v269
        %271 = vmatprep.subr.mxu0 0.0
        %v272 = vand.u32 %v233, 4294901760
        %273 = vmatpush1.xpose.msra.mxu0 %v272
        %274 = vmatprep.subr.mxu0 0.0
        %v275 = vand.u32 %v230, 4294901760
        %276 = vmatpush1.xpose.msra.mxu0 %v275
        %277 = vmatprep.subr.mxu0 0.0
        %v278 = vand.u32 %v227, 4294901760
        %279 = vmatpush1.xpose.msra.mxu0 %v278
        %280 = vmatprep.subr.mxu0 0.0
        %v281 = vand.u32 %v224, 4294901760
        %282 = vmatpush1.xpose.msra.mxu0 %v281
        %283 = vmatprep.subr.mxu0 0.0
        %v284 = vand.u32 %v221, 4294901760
        %285 = vmatpush1.xpose.msra.mxu0 %v284
        %286 = vmatprep.subr.mxu0 0.0
        %v287 = vand.u32 %v218, 4294901760
        %288 = vmatpush1.xpose.msra.mxu0 %v287
        %289 = vmatprep.subr.mxu0 0.0
        %v290 = vand.u32 %v215, 4294901760
        %291 = vmatpush1.xpose.msra.mxu0 %v290
        %292 = vmatprep.subr.mxu0 0.0
        %v293 = vand.u32 %v212, 4294901760
        %294 = vmatpush1.xpose.msra.mxu0 %v293
        %295 = vmatprep.subr.mxu0 0.0
        %v296 = vand.u32 %v209, 4294901760
        %297 = vmatpush1.xpose.msra.mxu0 %v296
        %298 = vmatprep.subr.mxu0 0.0
        %v299 = vand.u32 %v206, 4294901760
        %300 = vmatpush1.xpose.msra.mxu0 %v299
        %301 = vmatprep.subr.mxu0 0.0
        %302 = vmatpush2.xpose.msra.mxu0 0.0
        %303 = vmatprep.subr.mxu0 0.0
        %304 = vmatpush2.xpose.msra.mxu0 0.0
        %305 = vmatprep.subr.mxu0 0.0
        %306 = vmatpush2.xpose.msra.mxu0 0.0
        %307 = vmatprep.subr.mxu0 0.0
        %308 = vmatpush2.xpose.msra.mxu0 0.0
        %309 = vmatprep.subr.mxu0 0.0
        %310 = vmatpush2.xpose.msra.mxu0 0.0
        %311 = vmatprep.subr.mxu0 0.0
        %312 = vmatpush2.xpose.msra.mxu0 0.0
        %313 = vmatprep.subr.mxu0 0.0
        %314 = vmatpush2.xpose.msra.mxu0 0.0
        %315 = vmatprep.subr.mxu0 0.0
        %316 = vmatpush2.xpose.msra.mxu0 0.0
        %317 = vmatprep.subr.mxu0 0.0
        %318 = vmatpush2.xpose.msra.mxu0 0.0
        %319 = vmatprep.subr.mxu0 0.0
        %320 = vmatpush2.xpose.msra.mxu0 0.0
        %321 = vmatprep.subr.mxu0 0.0
        %322 = vmatpush2.xpose.msra.mxu0 0.0
        %323 = vmatprep.subr.mxu0 0.0
        %324 = vmatpush2.xpose.msra.mxu0 0.0
        %325 = vmatprep.subr.mxu0 0.0
        %326 = vmatpush2.xpose.msra.mxu0 0.0
        %327 = vmatprep.subr.mxu0 0.0
        %328 = vmatpush2.xpose.msra.mxu0 0.0
        %329 = vmatprep.subr.mxu0 0.0
        %330 = vmatpush2.xpose.msra.mxu0 0.0
        %331 = vmatprep.subr.mxu0 0.0
        %332 = vmatpush2.xpose.msra.mxu0 0.0
        %333 = vmatprep.mubr.f32.mxu0 0.0
        %v334 = vand.u32 %v203, 4294901760
        %v335 = vsub.f32 %v203, %v334
        %v336 = vand.u32 %v335, 4294901760
        %v337 = vsub.f32 %v335, %v336
        %v338 = vand.u32 %v337, 4294901760
        %339 = vmatmul.mubr.f32.gmra.mxu0 %v338
        %v340 = vpop.f32.mrf.mxu0
        %v341 = vadd.f32 0.0, %v340
        %v342 = vpop.f32.mrf.mxu0
        %343 = vdwg.mxu0
        %344 = vmatprep.subr.mxu0 0.0
        %v345 = vand.u32 %v251, 4294901760
        %v346 = vsub.f32 %v251, %v345
        %v347 = vand.u32 %v346, 4294901760
        %v348 = vsub.f32 %v346, %v347
        %v349 = vand.u32 %v348, 4294901760
        %350 = vmatpush1.xpose.msra.mxu0 %v349
        %351 = vmatprep.subr.mxu0 0.0
        %v352 = vand.u32 %v248, 4294901760
        %v353 = vsub.f32 %v248, %v352
        %v354 = vand.u32 %v353, 4294901760
        %v355 = vsub.f32 %v353, %v354
        %v356 = vand.u32 %v355, 4294901760
        %357 = vmatpush1.xpose.msra.mxu0 %v356
        %358 = vmatprep.subr.mxu0 0.0
        %v359 = vand.u32 %v245, 4294901760
        %v360 = vsub.f32 %v245, %v359
        %v361 = vand.u32 %v360, 4294901760
        %v362 = vsub.f32 %v360, %v361
        %v363 = vand.u32 %v362, 4294901760
        %364 = vmatpush1.xpose.msra.mxu0 %v363
        %365 = vmatprep.subr.mxu0 0.0
        %v366 = vand.u32 %v242, 4294901760
        %v367 = vsub.f32 %v242, %v366
        %v368 = vand.u32 %v367, 4294901760
        %v369 = vsub.f32 %v367, %v368
        %v370 = vand.u32 %v369, 4294901760
        %371 = vmatpush1.xpose.msra.mxu0 %v370
        %372 = vmatprep.subr.mxu0 0.0
        %v373 = vand.u32 %v239, 4294901760
        %v374 = vsub.f32 %v239, %v373
        %v375 = vand.u32 %v374, 4294901760
        %v376 = vsub.f32 %v374, %v375
        %v377 = vand.u32 %v376, 4294901760
        %378 = vmatpush1.xpose.msra.mxu0 %v377
        %379 = vmatprep.subr.mxu0 0.0
        %v380 = vand.u32 %v236, 4294901760
        %v381 = vsub.f32 %v236, %v380
        %v382 = vand.u32 %v381, 4294901760
        %v383 = vsub.f32 %v381, %v382
        %v384 = vand.u32 %v383, 4294901760
        %385 = vmatpush1.xpose.msra.mxu0 %v384
        %386 = vmatprep.subr.mxu0 0.0
        %v387 = vand.u32 %v233, 4294901760
        %v388 = vsub.f32 %v233, %v387
        %v389 = vand.u32 %v388, 4294901760
        %v390 = vsub.f32 %v388, %v389
        %v391 = vand.u32 %v390, 4294901760
        %392 = vmatpush1.xpose.msra.mxu0 %v391
        %393 = vmatprep.subr.mxu0 0.0
        %v394 = vand.u32 %v230, 4294901760
        %v395 = vsub.f32 %v230, %v394
        %v396 = vand.u32 %v395, 4294901760
        %v397 = vsub.f32 %v395, %v396
        %v398 = vand.u32 %v397, 4294901760
        %399 = vmatpush1.xpose.msra.mxu0 %v398
        %400 = vmatprep.subr.mxu0 0.0
        %v401 = vand.u32 %v227, 4294901760
        %v402 = vsub.f32 %v227, %v401
        %v403 = vand.u32 %v402, 4294901760
        %v404 = vsub.f32 %v402, %v403
        %v405 = vand.u32 %v404, 4294901760
        %406 = vmatpush1.xpose.msra.mxu0 %v405
        %407 = vmatprep.subr.mxu0 0.0
        %v408 = vand.u32 %v224, 4294901760
        %v409 = vsub.f32 %v224, %v408
        %v410 = vand.u32 %v409, 4294901760
        %v411 = vsub.f32 %v409, %v410
        %v412 = vand.u32 %v411, 4294901760
        %413 = vmatpush1.xpose.msra.mxu0 %v412
        %414 = vmatprep.subr.mxu0 0.0
        %v415 = vand.u32 %v221, 4294901760
        %v416 = vsub.f32 %v221, %v415
        %v417 = vand.u32 %v416, 4294901760
        %v418 = vsub.f32 %v416, %v417
        %v419 = vand.u32 %v418, 4294901760
        %420 = vmatpush1.xpose.msra.mxu0 %v419
        %421 = vmatprep.subr.mxu0 0.0
        %v422 = vand.u32 %v218, 4294901760
        %v423 = vsub.f32 %v218, %v422
        %v424 = vand.u32 %v423, 4294901760
        %v425 = vsub.f32 %v423, %v424
        %v426 = vand.u32 %v425, 4294901760
        %427 = vmatpush1.xpose.msra.mxu0 %v426
        %428 = vmatprep.subr.mxu0 0.0
        %v429 = vand.u32 %v215, 4294901760
        %v430 = vsub.f32 %v215, %v429
        %v431 = vand.u32 %v430, 4294901760
        %v432 = vsub.f32 %v430, %v431
        %v433 = vand.u32 %v432, 4294901760
        %434 = vmatpush1.xpose.msra.mxu0 %v433
        %435 = vmatprep.subr.mxu0 0.0
        %v436 = vand.u32 %v212, 4294901760
        %v437 = vsub.f32 %v212, %v436
        %v438 = vand.u32 %v437, 4294901760
        %v439 = vsub.f32 %v437, %v438
        %v440 = vand.u32 %v439, 4294901760
        %441 = vmatpush1.xpose.msra.mxu0 %v440
        %442 = vmatprep.subr.mxu0 0.0
        %v443 = vand.u32 %v209, 4294901760
        %v444 = vsub.f32 %v209, %v443
        %v445 = vand.u32 %v444, 4294901760
        %v446 = vsub.f32 %v444, %v445
        %v447 = vand.u32 %v446, 4294901760
        %448 = vmatpush1.xpose.msra.mxu0 %v447
        %449 = vmatprep.subr.mxu0 0.0
        %v450 = vand.u32 %v206, 4294901760
        %v451 = vsub.f32 %v206, %v450
        %v452 = vand.u32 %v451, 4294901760
        %v453 = vsub.f32 %v451, %v452
        %v454 = vand.u32 %v453, 4294901760
        %455 = vmatpush1.xpose.msra.mxu0 %v454
        %456 = vmatprep.subr.mxu0 0.0
        %457 = vmatpush2.xpose.msra.mxu0 0.0
        %458 = vmatprep.subr.mxu0 0.0
        %459 = vmatpush2.xpose.msra.mxu0 0.0
        %460 = vmatprep.subr.mxu0 0.0
        %461 = vmatpush2.xpose.msra.mxu0 0.0
        %462 = vmatprep.subr.mxu0 0.0
        %463 = vmatpush2.xpose.msra.mxu0 0.0
        %464 = vmatprep.subr.mxu0 0.0
        %465 = vmatpush2.xpose.msra.mxu0 0.0
        %466 = vmatprep.subr.mxu0 0.0
        %467 = vmatpush2.xpose.msra.mxu0 0.0
        %468 = vmatprep.subr.mxu0 0.0
        %469 = vmatpush2.xpose.msra.mxu0 0.0
        %470 = vmatprep.subr.mxu0 0.0
        %471 = vmatpush2.xpose.msra.mxu0 0.0
        %472 = vmatprep.subr.mxu0 0.0
        %473 = vmatpush2.xpose.msra.mxu0 0.0
        %474 = vmatprep.subr.mxu0 0.0
        %475 = vmatpush2.xpose.msra.mxu0 0.0
        %476 = vmatprep.subr.mxu0 0.0
        %477 = vmatpush2.xpose.msra.mxu0 0.0
        %478 = vmatprep.subr.mxu0 0.0
        %479 = vmatpush2.xpose.msra.mxu0 0.0
        %480 = vmatprep.subr.mxu0 0.0
        %481 = vmatpush2.xpose.msra.mxu0 0.0
        %482 = vmatprep.subr.mxu0 0.0
        %483 = vmatpush2.xpose.msra.mxu0 0.0
        %484 = vmatprep.subr.mxu0 0.0
        %485 = vmatpush2.xpose.msra.mxu0 0.0
        %486 = vmatprep.subr.mxu0 0.0
        %487 = vmatpush2.xpose.msra.mxu0 0.0
        %488 = vmatprep.mubr.f32.mxu0 0.0
        %v489 = vand.u32 %v203, 4294901760
        %490 = vmatmul.mubr.f32.gmra.mxu0 %v489
        %v491 = vpop.f32.mrf.mxu0
        %v492 = vadd.f32 %v341, %v491
        %v493 = vpop.f32.mrf.mxu0
        %494 = vdwg.mxu0
        %495 = vmatprep.subr.mxu0 0.0
        %v496 = vand.u32 %v251, 4294901760
        %v497 = vsub.f32 %v251, %v496
        %498 = vmatpush1.xpose.msra.mxu0 %v497
        %499 = vmatprep.subr.mxu0 0.0
        %v500 = vand.u32 %v248, 4294901760
        %v501 = vsub.f32 %v248, %v500
        %502 = vmatpush1.xpose.msra.mxu0 %v501
        %503 = vmatprep.subr.mxu0 0.0
        %v504 = vand.u32 %v245, 4294901760
        %v505 = vsub.f32 %v245, %v504
        %506 = vmatpush1.xpose.msra.mxu0 %v505
        %507 = vmatprep.subr.mxu0 0.0
        %v508 = vand.u32 %v242, 4294901760
        %v509 = vsub.f32 %v242, %v508
        %510 = vmatpush1.xpose.msra.mxu0 %v509
        %511 = vmatprep.subr.mxu0 0.0
        %v512 = vand.u32 %v239, 4294901760
        %v513 = vsub.f32 %v239, %v512
        %514 = vmatpush1.xpose.msra.mxu0 %v513
        %515 = vmatprep.subr.mxu0 0.0
        %v516 = vand.u32 %v236, 4294901760
        %v517 = vsub.f32 %v236, %v516
        %518 = vmatpush1.xpose.msra.mxu0 %v517
        %519 = vmatprep.subr.mxu0 0.0
        %v520 = vand.u32 %v233, 4294901760
        %v521 = vsub.f32 %v233, %v520
        %522 = vmatpush1.xpose.msra.mxu0 %v521
        %523 = vmatprep.subr.mxu0 0.0
        %v524 = vand.u32 %v230, 4294901760
        %v525 = vsub.f32 %v230, %v524
        %526 = vmatpush1.xpose.msra.mxu0 %v525
        %527 = vmatprep.subr.mxu0 0.0
        %v528 = vand.u32 %v227, 4294901760
        %v529 = vsub.f32 %v227, %v528
        %530 = vmatpush1.xpose.msra.mxu0 %v529
        %531 = vmatprep.subr.mxu0 0.0
        %v532 = vand.u32 %v224, 4294901760
        %v533 = vsub.f32 %v224, %v532
        %534 = vmatpush1.xpose.msra.mxu0 %v533
        %535 = vmatprep.subr.mxu0 0.0
        %v536 = vand.u32 %v221, 4294901760
        %v537 = vsub.f32 %v221, %v536
        %538 = vmatpush1.xpose.msra.mxu0 %v537
        %539 = vmatprep.subr.mxu0 0.0
        %v540 = vand.u32 %v218, 4294901760
        %v541 = vsub.f32 %v218, %v540
        %542 = vmatpush1.xpose.msra.mxu0 %v541
        %543 = vmatprep.subr.mxu0 0.0
        %v544 = vand.u32 %v215, 4294901760
        %v545 = vsub.f32 %v215, %v544
        %546 = vmatpush1.xpose.msra.mxu0 %v545
        %547 = vmatprep.subr.mxu0 0.0
        %v548 = vand.u32 %v212, 4294901760
        %v549 = vsub.f32 %v212, %v548
        %550 = vmatpush1.xpose.msra.mxu0 %v549
        %551 = vmatprep.subr.mxu0 0.0
        %v552 = vand.u32 %v209, 4294901760
        %v553 = vsub.f32 %v209, %v552
        %554 = vmatpush1.xpose.msra.mxu0 %v553
        %555 = vmatprep.subr.mxu0 0.0
        %v556 = vand.u32 %v206, 4294901760
        %v557 = vsub.f32 %v206, %v556
        %558 = vmatpush1.xpose.msra.mxu0 %v557
        %559 = vmatprep.subr.mxu0 0.0
        %560 = vmatpush2.xpose.msra.mxu0 0.0
        %561 = vmatprep.subr.mxu0 0.0
        %562 = vmatpush2.xpose.msra.mxu0 0.0
        %563 = vmatprep.subr.mxu0 0.0
        %564 = vmatpush2.xpose.msra.mxu0 0.0
        %565 = vmatprep.subr.mxu0 0.0
        %566 = vmatpush2.xpose.msra.mxu0 0.0
        %567 = vmatprep.subr.mxu0 0.0
        %568 = vmatpush2.xpose.msra.mxu0 0.0
        %569 = vmatprep.subr.mxu0 0.0
        %570 = vmatpush2.xpose.msra.mxu0 0.0
        %571 = vmatprep.subr.mxu0 0.0
        %572 = vmatpush2.xpose.msra.mxu0 0.0
        %573 = vmatprep.subr.mxu0 0.0
        %574 = vmatpush2.xpose.msra.mxu0 0.0
        %575 = vmatprep.subr.mxu0 0.0
        %576 = vmatpush2.xpose.msra.mxu0 0.0
        %577 = vmatprep.subr.mxu0 0.0
        %578 = vmatpush2.xpose.msra.mxu0 0.0
        %579 = vmatprep.subr.mxu0 0.0
        %580 = vmatpush2.xpose.msra.mxu0 0.0
        %581 = vmatprep.subr.mxu0 0.0
        %582 = vmatpush2.xpose.msra.mxu0 0.0
        %583 = vmatprep.subr.mxu0 0.0
        %584 = vmatpush2.xpose.msra.mxu0 0.0
        %585 = vmatprep.subr.mxu0 0.0
        %586 = vmatpush2.xpose.msra.mxu0 0.0
        %587 = vmatprep.subr.mxu0 0.0
        %588 = vmatpush2.xpose.msra.mxu0 0.0
        %589 = vmatprep.subr.mxu0 0.0
        %590 = vmatpush2.xpose.msra.mxu0 0.0
        %591 = vmatprep.mubr.f32.mxu0 0.0
        %v592 = vand.u32 %v203, 4294901760
        %v593 = vsub.f32 %v203, %v592
        %594 = vmatmul.mubr.f32.gmra.mxu0 %v593
        %v595 = vpop.f32.mrf.mxu0
        %v596 = vadd.f32 %v492, %v595
        %v597 = vpop.f32.mrf.mxu0
        %598 = vdwg.mxu0
        %599 = vmatprep.subr.mxu0 0.0
        %v600 = vand.u32 %v251, 4294901760
        %601 = vmatpush1.xpose.msra.mxu0 %v600
        %602 = vmatprep.subr.mxu0 0.0
        %v603 = vand.u32 %v248, 4294901760
        %604 = vmatpush1.xpose.msra.mxu0 %v603
        %605 = vmatprep.subr.mxu0 0.0
        %v606 = vand.u32 %v245, 4294901760
        %607 = vmatpush1.xpose.msra.mxu0 %v606
        %608 = vmatprep.subr.mxu0 0.0
        %v609 = vand.u32 %v242, 4294901760
        %610 = vmatpush1.xpose.msra.mxu0 %v609
        %611 = vmatprep.subr.mxu0 0.0
        %v612 = vand.u32 %v239, 4294901760
        %613 = vmatpush1.xpose.msra.mxu0 %v612
        %614 = vmatprep.subr.mxu0 0.0
        %v615 = vand.u32 %v236, 4294901760
        %616 = vmatpush1.xpose.msra.mxu0 %v615
        %617 = vmatprep.subr.mxu0 0.0
        %v618 = vand.u32 %v233, 4294901760
        %619 = vmatpush1.xpose.msra.mxu0 %v618
        %620 = vmatprep.subr.mxu0 0.0
        %v621 = vand.u32 %v230, 4294901760
        %622 = vmatpush1.xpose.msra.mxu0 %v621
        %623 = vmatprep.subr.mxu0 0.0
        %v624 = vand.u32 %v227, 4294901760
        %625 = vmatpush1.xpose.msra.mxu0 %v624
        %626 = vmatprep.subr.mxu0 0.0
        %v627 = vand.u32 %v224, 4294901760
        %628 = vmatpush1.xpose.msra.mxu0 %v627
        %629 = vmatprep.subr.mxu0 0.0
        %v630 = vand.u32 %v221, 4294901760
        %631 = vmatpush1.xpose.msra.mxu0 %v630
        %632 = vmatprep.subr.mxu0 0.0
        %v633 = vand.u32 %v218, 4294901760
        %634 = vmatpush1.xpose.msra.mxu0 %v633
        %635 = vmatprep.subr.mxu0 0.0
        %v636 = vand.u32 %v215, 4294901760
        %637 = vmatpush1.xpose.msra.mxu0 %v636
        %638 = vmatprep.subr.mxu0 0.0
        %v639 = vand.u32 %v212, 4294901760
        %640 = vmatpush1.xpose.msra.mxu0 %v639
        %641 = vmatprep.subr.mxu0 0.0
        %v642 = vand.u32 %v209, 4294901760
        %643 = vmatpush1.xpose.msra.mxu0 %v642
        %644 = vmatprep.subr.mxu0 0.0
        %v645 = vand.u32 %v206, 4294901760
        %646 = vmatpush1.xpose.msra.mxu0 %v645
        %647 = vmatprep.subr.mxu0 0.0
        %648 = vmatpush2.xpose.msra.mxu0 0.0
        %649 = vmatprep.subr.mxu0 0.0
        %650 = vmatpush2.xpose.msra.mxu0 0.0
        %651 = vmatprep.subr.mxu0 0.0
        %652 = vmatpush2.xpose.msra.mxu0 0.0
        %653 = vmatprep.subr.mxu0 0.0
        %654 = vmatpush2.xpose.msra.mxu0 0.0
        %655 = vmatprep.subr.mxu0 0.0
        %656 = vmatpush2.xpose.msra.mxu0 0.0
        %657 = vmatprep.subr.mxu0 0.0
        %658 = vmatpush2.xpose.msra.mxu0 0.0
        %659 = vmatprep.subr.mxu0 0.0
        %660 = vmatpush2.xpose.msra.mxu0 0.0
        %661 = vmatprep.subr.mxu0 0.0
        %662 = vmatpush2.xpose.msra.mxu0 0.0
        %663 = vmatprep.subr.mxu0 0.0
        %664 = vmatpush2.xpose.msra.mxu0 0.0
        %665 = vmatprep.subr.mxu0 0.0
        %666 = vmatpush2.xpose.msra.mxu0 0.0
        %667 = vmatprep.subr.mxu0 0.0
        %668 = vmatpush2.xpose.msra.mxu0 0.0
        %669 = vmatprep.subr.mxu0 0.0
        %670 = vmatpush2.xpose.msra.mxu0 0.0
        %671 = vmatprep.subr.mxu0 0.0
        %672 = vmatpush2.xpose.msra.mxu0 0.0
        %673 = vmatprep.subr.mxu0 0.0
        %674 = vmatpush2.xpose.msra.mxu0 0.0
        %675 = vmatprep.subr.mxu0 0.0
        %676 = vmatpush2.xpose.msra.mxu0 0.0
        %677 = vmatprep.subr.mxu0 0.0
        %678 = vmatpush2.xpose.msra.mxu0 0.0
        %679 = vmatprep.mubr.f32.mxu0 0.0
        %v680 = vand.u32 %v203, 4294901760
        %v681 = vsub.f32 %v203, %v680
        %v682 = vand.u32 %v681, 4294901760
        %683 = vmatmul.mubr.f32.gmra.mxu0 %v682
        %v684 = vpop.f32.mrf.mxu0
        %v685 = vadd.f32 %v596, %v684
        %v686 = vpop.f32.mrf.mxu0
        %687 = vdwg.mxu0
        %688 = vmatprep.subr.mxu0 0.0
        %v689 = vand.u32 %v251, 4294901760
        %v690 = vsub.f32 %v251, %v689
        %v691 = vand.u32 %v690, 4294901760
        %692 = vmatpush1.xpose.msra.mxu0 %v691
        %693 = vmatprep.subr.mxu0 0.0
        %v694 = vand.u32 %v248, 4294901760
        %v695 = vsub.f32 %v248, %v694
        %v696 = vand.u32 %v695, 4294901760
        %697 = vmatpush1.xpose.msra.mxu0 %v696
        %698 = vmatprep.subr.mxu0 0.0
        %v699 = vand.u32 %v245, 4294901760
        %v700 = vsub.f32 %v245, %v699
        %v701 = vand.u32 %v700, 4294901760
        %702 = vmatpush1.xpose.msra.mxu0 %v701
        %703 = vmatprep.subr.mxu0 0.0
        %v704 = vand.u32 %v242, 4294901760
        %v705 = vsub.f32 %v242, %v704
        %v706 = vand.u32 %v705, 4294901760
        %707 = vmatpush1.xpose.msra.mxu0 %v706
        %708 = vmatprep.subr.mxu0 0.0
        %v709 = vand.u32 %v239, 4294901760
        %v710 = vsub.f32 %v239, %v709
        %v711 = vand.u32 %v710, 4294901760
        %712 = vmatpush1.xpose.msra.mxu0 %v711
        %713 = vmatprep.subr.mxu0 0.0
        %v714 = vand.u32 %v236, 4294901760
        %v715 = vsub.f32 %v236, %v714
        %v716 = vand.u32 %v715, 4294901760
        %717 = vmatpush1.xpose.msra.mxu0 %v716
        %718 = vmatprep.subr.mxu0 0.0
        %v719 = vand.u32 %v233, 4294901760
        %v720 = vsub.f32 %v233, %v719
        %v721 = vand.u32 %v720, 4294901760
        %722 = vmatpush1.xpose.msra.mxu0 %v721
        %723 = vmatprep.subr.mxu0 0.0
        %v724 = vand.u32 %v230, 4294901760
        %v725 = vsub.f32 %v230, %v724
        %v726 = vand.u32 %v725, 4294901760
        %727 = vmatpush1.xpose.msra.mxu0 %v726
        %728 = vmatprep.subr.mxu0 0.0
        %v729 = vand.u32 %v227, 4294901760
        %v730 = vsub.f32 %v227, %v729
        %v731 = vand.u32 %v730, 4294901760
        %732 = vmatpush1.xpose.msra.mxu0 %v731
        %733 = vmatprep.subr.mxu0 0.0
        %v734 = vand.u32 %v224, 4294901760
        %v735 = vsub.f32 %v224, %v734
        %v736 = vand.u32 %v735, 4294901760
        %737 = vmatpush1.xpose.msra.mxu0 %v736
        %738 = vmatprep.subr.mxu0 0.0
        %v739 = vand.u32 %v221, 4294901760
        %v740 = vsub.f32 %v221, %v739
        %v741 = vand.u32 %v740, 4294901760
        %742 = vmatpush1.xpose.msra.mxu0 %v741
        %743 = vmatprep.subr.mxu0 0.0
        %v744 = vand.u32 %v218, 4294901760
        %v745 = vsub.f32 %v218, %v744
        %v746 = vand.u32 %v745, 4294901760
        %747 = vmatpush1.xpose.msra.mxu0 %v746
        %748 = vmatprep.subr.mxu0 0.0
        %v749 = vand.u32 %v215, 4294901760
        %v750 = vsub.f32 %v215, %v749
        %v751 = vand.u32 %v750, 4294901760
        %752 = vmatpush1.xpose.msra.mxu0 %v751
        %753 = vmatprep.subr.mxu0 0.0
        %v754 = vand.u32 %v212, 4294901760
        %v755 = vsub.f32 %v212, %v754
        %v756 = vand.u32 %v755, 4294901760
        %757 = vmatpush1.xpose.msra.mxu0 %v756
        %758 = vmatprep.subr.mxu0 0.0
        %v759 = vand.u32 %v209, 4294901760
        %v760 = vsub.f32 %v209, %v759
        %v761 = vand.u32 %v760, 4294901760
        %762 = vmatpush1.xpose.msra.mxu0 %v761
        %763 = vmatprep.subr.mxu0 0.0
        %v764 = vand.u32 %v206, 4294901760
        %v765 = vsub.f32 %v206, %v764
        %v766 = vand.u32 %v765, 4294901760
        %767 = vmatpush1.xpose.msra.mxu0 %v766
        %768 = vmatprep.subr.mxu0 0.0
        %769 = vmatpush2.xpose.msra.mxu0 0.0
        %770 = vmatprep.subr.mxu0 0.0
        %771 = vmatpush2.xpose.msra.mxu0 0.0
        %772 = vmatprep.subr.mxu0 0.0
        %773 = vmatpush2.xpose.msra.mxu0 0.0
        %774 = vmatprep.subr.mxu0 0.0
        %775 = vmatpush2.xpose.msra.mxu0 0.0
        %776 = vmatprep.subr.mxu0 0.0
        %777 = vmatpush2.xpose.msra.mxu0 0.0
        %778 = vmatprep.subr.mxu0 0.0
        %779 = vmatpush2.xpose.msra.mxu0 0.0
        %780 = vmatprep.subr.mxu0 0.0
        %781 = vmatpush2.xpose.msra.mxu0 0.0
        %782 = vmatprep.subr.mxu0 0.0
        %783 = vmatpush2.xpose.msra.mxu0 0.0
        %784 = vmatprep.subr.mxu0 0.0
        %785 = vmatpush2.xpose.msra.mxu0 0.0
        %786 = vmatprep.subr.mxu0 0.0
        %787 = vmatpush2.xpose.msra.mxu0 0.0
        %788 = vmatprep.subr.mxu0 0.0
        %789 = vmatpush2.xpose.msra.mxu0 0.0
        %790 = vmatprep.subr.mxu0 0.0
        %791 = vmatpush2.xpose.msra.mxu0 0.0
        %792 = vmatprep.subr.mxu0 0.0
        %793 = vmatpush2.xpose.msra.mxu0 0.0
        %794 = vmatprep.subr.mxu0 0.0
        %795 = vmatpush2.xpose.msra.mxu0 0.0
        %796 = vmatprep.subr.mxu0 0.0
        %797 = vmatpush2.xpose.msra.mxu0 0.0
        %798 = vmatprep.subr.mxu0 0.0
        %799 = vmatpush2.xpose.msra.mxu0 0.0
        %800 = vmatprep.mubr.f32.mxu0 0.0
        %v801 = vand.u32 %v203, 4294901760
        %802 = vmatmul.mubr.f32.gmra.mxu0 %v801
        %v803 = vpop.f32.mrf.mxu0
        %v804 = vadd.f32 %v685, %v803
        %v805 = vpop.f32.mrf.mxu0
        %806 = vdwg.mxu0
        %807 = vmatprep.subr.mxu0 0.0
        %v808 = vand.u32 %v251, 4294901760
        %809 = vmatpush1.xpose.msra.mxu0 %v808
        %810 = vmatprep.subr.mxu0 0.0
        %v811 = vand.u32 %v248, 4294901760
        %812 = vmatpush1.xpose.msra.mxu0 %v811
        %813 = vmatprep.subr.mxu0 0.0
        %v814 = vand.u32 %v245, 4294901760
        %815 = vmatpush1.xpose.msra.mxu0 %v814
        %816 = vmatprep.subr.mxu0 0.0
        %v817 = vand.u32 %v242, 4294901760
        %818 = vmatpush1.xpose.msra.mxu0 %v817
        %819 = vmatprep.subr.mxu0 0.0
        %v820 = vand.u32 %v239, 4294901760
        %821 = vmatpush1.xpose.msra.mxu0 %v820
        %822 = vmatprep.subr.mxu0 0.0
        %v823 = vand.u32 %v236, 4294901760
        %824 = vmatpush1.xpose.msra.mxu0 %v823
        %825 = vmatprep.subr.mxu0 0.0
        %v826 = vand.u32 %v233, 4294901760
        %827 = vmatpush1.xpose.msra.mxu0 %v826
        %828 = vmatprep.subr.mxu0 0.0
        %v829 = vand.u32 %v230, 4294901760
        %830 = vmatpush1.xpose.msra.mxu0 %v829
        %831 = vmatprep.subr.mxu0 0.0
        %v832 = vand.u32 %v227, 4294901760
        %833 = vmatpush1.xpose.msra.mxu0 %v832
        %834 = vmatprep.subr.mxu0 0.0
        %v835 = vand.u32 %v224, 4294901760
        %836 = vmatpush1.xpose.msra.mxu0 %v835
        %837 = vmatprep.subr.mxu0 0.0
        %v838 = vand.u32 %v221, 4294901760
        %839 = vmatpush1.xpose.msra.mxu0 %v838
        %840 = vmatprep.subr.mxu0 0.0
        %v841 = vand.u32 %v218, 4294901760
        %842 = vmatpush1.xpose.msra.mxu0 %v841
        %843 = vmatprep.subr.mxu0 0.0
        %v844 = vand.u32 %v215, 4294901760
        %845 = vmatpush1.xpose.msra.mxu0 %v844
        %846 = vmatprep.subr.mxu0 0.0
        %v847 = vand.u32 %v212, 4294901760
        %848 = vmatpush1.xpose.msra.mxu0 %v847
        %849 = vmatprep.subr.mxu0 0.0
        %v850 = vand.u32 %v209, 4294901760
        %851 = vmatpush1.xpose.msra.mxu0 %v850
        %852 = vmatprep.subr.mxu0 0.0
        %v853 = vand.u32 %v206, 4294901760
        %854 = vmatpush1.xpose.msra.mxu0 %v853
        %855 = vmatprep.subr.mxu0 0.0
        %856 = vmatpush2.xpose.msra.mxu0 0.0
        %857 = vmatprep.subr.mxu0 0.0
        %858 = vmatpush2.xpose.msra.mxu0 0.0
        %859 = vmatprep.subr.mxu0 0.0
        %860 = vmatpush2.xpose.msra.mxu0 0.0
        %861 = vmatprep.subr.mxu0 0.0
        %862 = vmatpush2.xpose.msra.mxu0 0.0
        %863 = vmatprep.subr.mxu0 0.0
        %864 = vmatpush2.xpose.msra.mxu0 0.0
        %865 = vmatprep.subr.mxu0 0.0
        %866 = vmatpush2.xpose.msra.mxu0 0.0
        %867 = vmatprep.subr.mxu0 0.0
        %868 = vmatpush2.xpose.msra.mxu0 0.0
        %869 = vmatprep.subr.mxu0 0.0
        %870 = vmatpush2.xpose.msra.mxu0 0.0
        %871 = vmatprep.subr.mxu0 0.0
        %872 = vmatpush2.xpose.msra.mxu0 0.0
        %873 = vmatprep.subr.mxu0 0.0
        %874 = vmatpush2.xpose.msra.mxu0 0.0
        %875 = vmatprep.subr.mxu0 0.0
        %876 = vmatpush2.xpose.msra.mxu0 0.0
        %877 = vmatprep.subr.mxu0 0.0
        %878 = vmatpush2.xpose.msra.mxu0 0.0
        %879 = vmatprep.subr.mxu0 0.0
        %880 = vmatpush2.xpose.msra.mxu0 0.0
        %881 = vmatprep.subr.mxu0 0.0
        %882 = vmatpush2.xpose.msra.mxu0 0.0
        %883 = vmatprep.subr.mxu0 0.0
        %884 = vmatpush2.xpose.msra.mxu0 0.0
        %885 = vmatprep.subr.mxu0 0.0
        %886 = vmatpush2.xpose.msra.mxu0 0.0
        %887 = vmatprep.mubr.f32.mxu0 0.0
        %v888 = vand.u32 %v203, 4294901760
        %889 = vmatmul.mubr.f32.gmra.mxu0 %v888
        %v890 = vpop.f32.mrf.mxu0
        %v891 = vadd.f32 %v804, %v890
        %v892 = vpop.f32.mrf.mxu0
        %893 = vdwg.mxu0
        %v894 = vld [vmem:[%s183] sm:$0x1]
        %895 = vset.pattern.permute.xlu0 31
        %896 = vperm.xlu0 %895, %v200
        %v897 = vpop.permute.xlu0 %896
        %v899 = vmul.f32 %v894, %v897
        %v900 = vadd.f32 %v891, %v899
        %901 = vset.pattern.permute.xlu0 32
        %902 = vperm.xlu0 %901, %v200
        %v903 = vpop.permute.xlu0 %902
        %v905 = vadd.f32 %v900, %v903
        %906 = vst [vmem:[%s174] sm:$0x1] %v905
        %s907 = sand.u32 %s98, 1
        %s908 = scalar_lea.sflag [#allocation3], %s907
        %s909 = sand.u32 %s98, 1
        %s910 = scalar_lea.vmem [#allocation2], %s909
        // Predicated region
        $region33: #{tpu_custom_call.1} parent=31 // pred_check
          %p911 = pneg %p108
        $region34: #{tpu_custom_call.1} parent=31 // pred_check_branch
          %913 = sbr.rel (%p911) target = $region36
        $region35: #{tpu_custom_call.1} parent=31 // pred_region
          %s915 = ssub.s32 16, 16
          %916 = vsyncadd %s908, %s915
          %s917 = smul.addr %s17, 16
          %s918 = scalar_lea.hbm %s3, %s917
          %s920 = sshll.u32 %s910, 4
          %s921 = int_to_ptr.vmem [resolvable:$true] %s920
          %923 = dma.vmem_to_hbm [thread:$0]  %s921, 16, %s918, %s908
        $region36: #{tpu_custom_call.1} parent=31 // pred_fallthru
          _
      $region32: #{tpu_custom_call.1} parent=5 // pred_fallthru
        _
      %p924 = scmp.le.s32.totalorder 2, %s12
      // Predicated region
      $region37: #{tpu_custom_call.1} parent=5 // pred_check
        %p925 = pneg %p924
      $region38: #{tpu_custom_call.1} parent=5 // pred_check_branch
        %927 = sbr.rel (%p925) target = $region40
      $region39: #{tpu_custom_call.1} parent=5 // pred_region
        %s928 = ssub.s32 %s12, 2
        // Predicated region
        $region41: #{tpu_custom_call.1} parent=39 // pred_check
          %p929 = pneg %p114
        $region42: #{tpu_custom_call.1} parent=39 // pred_check_branch
          %931 = sbr.rel (%p929) target = $region44
        $region43: #{tpu_custom_call.1} parent=39 // pred_region
          %s932 = sand.u32 %s99, 1
          %s933 = scalar_lea.sflag [#allocation3], %s932
          %s934 = sand.u32 %s99, 1
          %s935 = scalar_lea.vmem [#allocation2], %s934
          %936 = dma.done %s933, 16
        $region44: #{tpu_custom_call.1} parent=39 // pred_fallthru
          _
      $region40: #{tpu_custom_call.1} parent=5 // pred_fallthru
        _
    $region6: #{tpu_custom_call.1} parent=1 // loop_footer
      %s16 = sadd.s32 1, %s12
    $region7: #{tpu_custom_call.1} parent=1 // loop_footer_branch
      %11 = sbr.rel target = $region3
    $region8: #{tpu_custom_call.1} parent=1 // loop_exit
      _
    %937 = vsyncpa [#allocation3], 1
    %s938 = scalar_lea.sflag [#allocation3], 1
    %939 = vsyncpa %s938, 1

</llo_original>
